<compile_context>
chip_gen: v6e
topology: v6e:2x2x1
jax: 0.10.0
libtpu: 0.0.40
codegen_flags: <defaults>
</compile_context>

<pallas_src>
import functools

import jax
import jax.numpy as jnp
from jax import lax
from jax.experimental import pallas as pl


def _attn_kernel(x_ref, ctx_ref, prm_ref, o_ref, *, b, c, cd, s_ctx):
    # x_ref:   (b*c, hw)      channel-major tokens, batch stacked on sublanes
    # ctx_ref: (b*s_ctx, cd)  context tokens, batch stacked on rows
    # prm_ref: (c+cd+1, 2c)   packed parameters:
    #            [0:c,     0:c ]  = Wq            (c, c)
    #            [0:c,     c   ]  = bq             (c, 1)
    #            [c:c+cd,  0:2c]  = [Wk^T | Wv^T]  (cd, 2c)
    #            [c+cd,    0:2c]  = [bk   | bv  ]  (1, 2c)
    # o_ref:   (b*c, hw)
    prm = prm_ref[...]
    wq = prm[0:c, 0:c]                          # (c, c)
    bq_col = prm[0:c, c:c + 1]                  # (c, 1)
    w_kv = prm[c:c + cd, 0:2 * c]               # (cd, 2c)
    b_kv = prm[c + cd:c + cd + 1, 0:2 * c]      # (1, 2c)

    x_all = x_ref[...]                          # (b*c, hw)
    ctx_all = ctx_ref[...]                      # (b*s, cd)

    # Fused k/v projection for ALL batch elements in one matmul: (b*s, 2c).
    kv_all = jnp.dot(ctx_all, w_kv, preferred_element_type=jnp.float32) + b_kv

    outs = []
    for bi in range(b):                         # static unroll (b is tiny)
        x_b = x_all[bi * c:(bi + 1) * c, :]     # (c, hw)
        # q^T : (c, hw) -- lane-dense, N = hw on the MXU.
        q_t = jnp.dot(wq, x_b, preferred_element_type=jnp.float32) + bq_col
        kv_b = kv_all[bi * s_ctx:(bi + 1) * s_ctx, :]   # (S, 2c)
        k = kv_b[:, 0:c]                        # (S, c)
        v = kv_b[:, c:2 * c]                    # (S, c)

        # scores^T : (S, hw)
        s_t = jnp.dot(k, q_t, preferred_element_type=jnp.float32)
        # numerically-stable softmax over the context axis (axis 0 here)
        s_t = s_t - jnp.max(s_t, axis=0, keepdims=True)
        e = jnp.exp(s_t)
        denom = jnp.sum(e, axis=0, keepdims=True)   # (1, hw)
        p_t = e * pl.reciprocal(denom, approx=False)

        # out^T = v^T @ p^T : (c, hw); S-axis contraction folded into the
        # MXU operand push (no explicit XLU transpose of v).
        out_t = lax.dot_general(
            v, p_t,
            dimension_numbers=(((0,), (0,)), ((), ())),
            preferred_element_type=jnp.float32)
        outs.append(out_t)

    # Single sublane-dense (b*c, hw) = (8, 256) store: unmasked full-vreg vst.
    o_ref[...] = jnp.concatenate(outs, axis=0).astype(o_ref.dtype)


def pack_params(params, c, cd):
    """Pack the six nn.Linear tensors into one (c+cd+1, max(2c, c+1)) f32 slab.

    Call ONCE at parameter-load time; the result is reused on every forward.
    """
    rows, cols = c + cd + 1, max(2 * c, c + 1)
    assert rows <= 8 and cols <= 128, "slab packing assumes tiny dims (c=4, cd=3)"
    slab = jnp.zeros((rows, cols), jnp.float32)
    slab = slab.at[0:c, 0:c].set(params["wq"].astype(jnp.float32))
    slab = slab.at[0:c, c:c + 1].set(params["bq"].reshape(c, 1).astype(jnp.float32))
    slab = slab.at[c:c + cd, 0:c].set(params["wk"].T.astype(jnp.float32))
    slab = slab.at[c:c + cd, c:2 * c].set(params["wv"].T.astype(jnp.float32))
    slab = slab.at[c + cd, 0:c].set(params["bk"].astype(jnp.float32))
    slab = slab.at[c + cd, c:2 * c].set(params["bv"].astype(jnp.float32))
    return slab


@jax.jit
def toy_submodule_forward(x_nchw, context, slab):
    """nn.Identity() is a no-op; then attn1 (ToyAttn) with the given context.

    x_nchw:  (b, c, h, w) f32
    context: (b, S, context_dim) f32
    slab:    packed parameters from pack_params()
    """
    b, c, h, w = x_nchw.shape
    hw = h * w
    s_ctx, cd = context.shape[1], context.shape[2]
    rows, cols = slab.shape
    assert rows == c + cd + 1 and cols == max(2 * c, c + 1)

    # Free views, no HBM transposes (channel-major kernel formulation).
    x_flat = x_nchw.reshape(b * c, hw)            # (8, 256)
    ctx_flat = context.reshape(b * s_ctx, cd)     # (16, 3)

    kernel = functools.partial(_attn_kernel, b=b, c=c, cd=cd, s_ctx=s_ctx)

    out_flat = pl.pallas_call(
        kernel,
        out_shape=jax.ShapeDtypeStruct((b * c, hw), x_nchw.dtype),
        # Gridless single-step call: whole-array blocks, one DMA each.
        in_specs=[
            pl.BlockSpec((b * c, hw), lambda: (0, 0)),        # x (8, 256)
            pl.BlockSpec((b * s_ctx, cd), lambda: (0, 0)),    # context (16, 3)
            pl.BlockSpec((rows, cols), lambda: (0, 0)),       # packed params (8, 8)
        ],
        out_specs=pl.BlockSpec((b * c, hw), lambda: (0, 0)),  # out (8, 256)
    )(x_flat, ctx_flat, slab)

    # (b*c, hw) -> (b, c, h, w): free view; identical to the PyTorch
    # out.view(b, h, w, c).permute(0, 3, 1, 2) result.
    return out_flat.reshape(b, c, h, w)


def _reference(x_nchw, context, params):
    """Pure-JAX reference matching the PyTorch forward exactly."""
    b, c, h, w = x_nchw.shape
    xs = jnp.transpose(x_nchw.reshape(b, c, h * w), (0, 2, 1))
    q = xs @ params["wq"].T + params["bq"]
    k = context @ params["wk"].T + params["bk"]
    v = context @ params["wv"].T + params["bv"]
    attn = jax.nn.softmax(jnp.einsum("bqd,bkd->bqk", q, k), axis=-1)
    out = jnp.einsum("bqk,bkd->bqd", attn, v)
    return jnp.transpose(out.reshape(b, h, w, c), (0, 3, 1, 2))


if __name__ == "__main__":
    in_dim, context_dim = 4, 3
    b, c, h, w = 2, in_dim, 16, 16
    s_ctx = 8

    key = jax.random.PRNGKey(0)
    k_x, k_ctx, kq, kbq, kk, kbk, kv_, kbv = jax.random.split(key, 8)

    x = jax.random.normal(k_x, (b, c, h, w), dtype=jnp.float32)
    context = jax.random.normal(k_ctx, (b, s_ctx, context_dim), dtype=jnp.float32)

    # deterministic parameter init (nn.Linear shapes: W = (out, in), b = (out,))
    params = {
        "wq": 0.3 * jax.random.normal(kq, (in_dim, in_dim), jnp.float32),
        "bq": 0.1 * jax.random.normal(kbq, (in_dim,), jnp.float32),
        "wk": 0.3 * jax.random.normal(kk, (in_dim, context_dim), jnp.float32),
        "bk": 0.1 * jax.random.normal(kbk, (in_dim,), jnp.float32),
        "wv": 0.3 * jax.random.normal(kv_, (in_dim, context_dim), jnp.float32),
        "bv": 0.1 * jax.random.normal(kbv, (in_dim,), jnp.float32),
    }

    # Parameter packing hoisted out of the forward path: done exactly once.
    slab = jax.block_until_ready(pack_params(params, in_dim, context_dim))

    out = toy_submodule_forward(x, context, slab)
    out = jax.block_until_ready(out)

    ref = _reference(x, context, params)
    assert out.shape == (b, c, h, w), out.shape
    assert jnp.allclose(out, ref, atol=1e-5, rtol=1e-5), "mismatch vs reference"

    print("KERNEL_OK")
</pallas_src>

<mosaic_0001>
module attributes {stable_mosaic.version = 11 : i64} {
  func.func @_attn_kernel(%arg0: memref<8x256xf32, #tpu.memory_space<vmem>>, %arg1: memref<16x3xf32, #tpu.memory_space<vmem>>, %arg2: memref<8x8xf32, #tpu.memory_space<vmem>>, %arg3: memref<8x256xf32, #tpu.memory_space<vmem>>) attributes {dimension_semantics = [], scalar_prefetch = 0 : i64, scratch_operands = 0 : i64, tpu.core_type = #tpu.core_type<tc>} {
    %c0 = arith.constant 0 : index
    %c0_0 = arith.constant 0 : index
    %0 = vector.load %arg2[%c0, %c0_0] : memref<8x8xf32, #tpu.memory_space<vmem>>, vector<8x8xf32>
    %1 = vector.extract_strided_slice %0 {offsets = [0, 0], sizes = [4, 4], strides = [1, 1]} : vector<8x8xf32> to vector<4x4xf32>
    %2 = vector.extract_strided_slice %0 {offsets = [0, 4], sizes = [4, 1], strides = [1, 1]} : vector<8x8xf32> to vector<4x1xf32>
    %3 = vector.extract_strided_slice %0 {offsets = [4, 0], sizes = [3, 8], strides = [1, 1]} : vector<8x8xf32> to vector<3x8xf32>
    %4 = vector.extract_strided_slice %0 {offsets = [7, 0], sizes = [1, 8], strides = [1, 1]} : vector<8x8xf32> to vector<1x8xf32>
    %c0_1 = arith.constant 0 : index
    %c0_2 = arith.constant 0 : index
    %5 = vector.load %arg0[%c0_1, %c0_2] : memref<8x256xf32, #tpu.memory_space<vmem>>, vector<8x256xf32>
    %c0_3 = arith.constant 0 : index
    %c0_4 = arith.constant 0 : index
    %6 = vector.load %arg1[%c0_3, %c0_4] : memref<16x3xf32, #tpu.memory_space<vmem>>, vector<16x3xf32>
    %cst = arith.constant dense<0.000000e+00> : vector<16x8xf32>
    %7 = tpu.matmul %6, %3, %cst {dimension_numbers = #tpu.dot_dimension_numbers<[1], [0], [0], [1], [0, 0, 1, 1], [], []>} : vector<16x3xf32>, vector<3x8xf32>, vector<16x8xf32> -> vector<16x8xf32>
    %8 = vector.broadcast %4 : vector<1x8xf32> to vector<16x8xf32>
    %9 = arith.addf %7, %8 : vector<16x8xf32>
    %10 = vector.extract_strided_slice %5 {offsets = [0, 0], sizes = [4, 256], strides = [1, 1]} : vector<8x256xf32> to vector<4x256xf32>
    %cst_5 = arith.constant dense<0.000000e+00> : vector<4x256xf32>
    %11 = tpu.matmul %1, %10, %cst_5 {dimension_numbers = #tpu.dot_dimension_numbers<[1], [0], [0], [1], [0, 0, 1, 1], [], []>} : vector<4x4xf32>, vector<4x256xf32>, vector<4x256xf32> -> vector<4x256xf32>
    %12 = vector.broadcast %2 : vector<4x1xf32> to vector<4x256xf32>
    %13 = arith.addf %11, %12 : vector<4x256xf32>
    %14 = vector.extract_strided_slice %9 {offsets = [0, 0], sizes = [8, 8], strides = [1, 1]} : vector<16x8xf32> to vector<8x8xf32>
    %15 = vector.extract_strided_slice %14 {offsets = [0, 0], sizes = [8, 4], strides = [1, 1]} : vector<8x8xf32> to vector<8x4xf32>
    %16 = vector.extract_strided_slice %14 {offsets = [0, 4], sizes = [8, 4], strides = [1, 1]} : vector<8x8xf32> to vector<8x4xf32>
    %cst_6 = arith.constant dense<0.000000e+00> : vector<8x256xf32>
    %17 = tpu.matmul %15, %13, %cst_6 {dimension_numbers = #tpu.dot_dimension_numbers<[1], [0], [0], [1], [0, 0, 1, 1], [], []>} : vector<8x4xf32>, vector<4x256xf32>, vector<8x256xf32> -> vector<8x256xf32>
    %cst_7 = arith.constant dense<0xFF800000> : vector<256xf32>
    %18 = vector.multi_reduction <maximumf>, %17, %cst_7 [0] : vector<8x256xf32> to vector<256xf32>
    %19 = vector.shape_cast %18 : vector<256xf32> to vector<1x256xf32>
    %20 = vector.broadcast %19 : vector<1x256xf32> to vector<8x256xf32>
    %21 = arith.subf %17, %20 : vector<8x256xf32>
    %22 = math.exp %21 : vector<8x256xf32>
    %cst_8 = arith.constant dense<0.000000e+00> : vector<256xf32>
    %23 = vector.multi_reduction <add>, %22, %cst_8 [0] : vector<8x256xf32> to vector<256xf32>
    %24 = vector.shape_cast %23 : vector<256xf32> to vector<1x256xf32>
    %25 = tpu.reciprocal %24 : vector<1x256xf32> -> vector<1x256xf32>
    %26 = vector.broadcast %25 : vector<1x256xf32> to vector<8x256xf32>
    %27 = arith.mulf %22, %26 : vector<8x256xf32>
    %cst_9 = arith.constant dense<0.000000e+00> : vector<4x256xf32>
    %28 = tpu.matmul %16, %27, %cst_9 {dimension_numbers = #tpu.dot_dimension_numbers<[0], [0], [1], [1], [0, 1, 1, 1], [], []>} : vector<8x4xf32>, vector<8x256xf32>, vector<4x256xf32> -> vector<4x256xf32>
    %29 = vector.extract_strided_slice %5 {offsets = [4, 0], sizes = [4, 256], strides = [1, 1]} : vector<8x256xf32> to vector<4x256xf32>
    %cst_10 = arith.constant dense<0.000000e+00> : vector<4x256xf32>
    %30 = tpu.matmul %1, %29, %cst_10 {dimension_numbers = #tpu.dot_dimension_numbers<[1], [0], [0], [1], [0, 0, 1, 1], [], []>} : vector<4x4xf32>, vector<4x256xf32>, vector<4x256xf32> -> vector<4x256xf32>
    %31 = vector.broadcast %2 : vector<4x1xf32> to vector<4x256xf32>
    %32 = arith.addf %30, %31 : vector<4x256xf32>
    %33 = vector.extract_strided_slice %9 {offsets = [8, 0], sizes = [8, 8], strides = [1, 1]} : vector<16x8xf32> to vector<8x8xf32>
    %34 = vector.extract_strided_slice %33 {offsets = [0, 0], sizes = [8, 4], strides = [1, 1]} : vector<8x8xf32> to vector<8x4xf32>
    %35 = vector.extract_strided_slice %33 {offsets = [0, 4], sizes = [8, 4], strides = [1, 1]} : vector<8x8xf32> to vector<8x4xf32>
    %cst_11 = arith.constant dense<0.000000e+00> : vector<8x256xf32>
    %36 = tpu.matmul %34, %32, %cst_11 {dimension_numbers = #tpu.dot_dimension_numbers<[1], [0], [0], [1], [0, 0, 1, 1], [], []>} : vector<8x4xf32>, vector<4x256xf32>, vector<8x256xf32> -> vector<8x256xf32>
    %cst_12 = arith.constant dense<0xFF800000> : vector<256xf32>
    %37 = vector.multi_reduction <maximumf>, %36, %cst_12 [0] : vector<8x256xf32> to vector<256xf32>
    %38 = vector.shape_cast %37 : vector<256xf32> to vector<1x256xf32>
    %39 = vector.broadcast %38 : vector<1x256xf32> to vector<8x256xf32>
    %40 = arith.subf %36, %39 : vector<8x256xf32>
    %41 = math.exp %40 : vector<8x256xf32>
    %cst_13 = arith.constant dense<0.000000e+00> : vector<256xf32>
    %42 = vector.multi_reduction <add>, %41, %cst_13 [0] : vector<8x256xf32> to vector<256xf32>
    %43 = vector.shape_cast %42 : vector<256xf32> to vector<1x256xf32>
    %44 = tpu.reciprocal %43 : vector<1x256xf32> -> vector<1x256xf32>
    %45 = vector.broadcast %44 : vector<1x256xf32> to vector<8x256xf32>
    %46 = arith.mulf %41, %45 : vector<8x256xf32>
    %cst_14 = arith.constant dense<0.000000e+00> : vector<4x256xf32>
    %47 = tpu.matmul %35, %46, %cst_14 {dimension_numbers = #tpu.dot_dimension_numbers<[0], [0], [1], [1], [0, 1, 1, 1], [], []>} : vector<8x4xf32>, vector<8x256xf32>, vector<4x256xf32> -> vector<4x256xf32>
    %48 = tpu.concatenate %28, %47 in 0 : vector<4x256xf32>, vector<4x256xf32> -> vector<8x256xf32>
    %c0_15 = arith.constant 0 : index
    %c0_16 = arith.constant 0 : index
    %49 = vector.load %arg3[%c0_15, %c0_16] : memref<8x256xf32, #tpu.memory_space<vmem>>, vector<8x256xf32>
    tpu.vector_store %arg3[%c0_15, %c0_16], %48 {strides = array<i32>} : memref<8x256xf32, #tpu.memory_space<vmem>>, vector<8x256xf32>,
    return
  }
}

</mosaic_0001>

<llo_original>
// kernel: toy_submodule_forward.1
$region0: #{toy_submodule_forward.1}
  #allocation0 [shape = 'u32[]', space=smem, size = 0x4, offset = 0x4, fixed_abs, tag = 'smem constant byte address 0x4 - core index']
  #allocation1 [shape = 'u32[144,128]{1,0:T(1,128)}', space=vmem, size = 0x12000, scoped, tag = 'internal scratch']
  %s0 = inlined_call_operand.vmem [shape: f32[8,256], index: 0, kind: input, shape index: {}]
  %s1 = inlined_call_operand.vmem [shape: f32[16,3], index: 1, kind: input, shape index: {}]
  %s2 = inlined_call_operand.vmem [shape: f32[8,8], index: 2, kind: input, shape index: {}]
  %s3 = inlined_call_operand.vmem [shape: f32[8,256], index: 3, kind: output, shape index: {}]
  %s4 = sld [smem:[#allocation0]]
  $region22: #{toy_submodule_forward.1} parent=0
    _
  %s6 = ssub.s32 1, %s4
  %s7 = scalar_select 0, %s6, %s4
  // Predicated region
  $region2: #{toy_submodule_forward.1} parent=0 // pred_check
    _
  $region3: #{toy_submodule_forward.1} parent=0 // pred_check_branch
    %9 = sbr.rel (0) target = $region5
  $region4: #{toy_submodule_forward.1} parent=0 // pred_region
    _
  $region5: #{toy_submodule_forward.1} parent=0 // pred_fallthru
    _
  // Predicated region
  $region6: #{toy_submodule_forward.1} parent=0 // pred_check
    _
  $region7: #{toy_submodule_forward.1} parent=0 // pred_check_branch
    %11 = sbr.rel (0) target = $region9
  $region8: #{toy_submodule_forward.1} parent=0 // pred_region
    _
  $region9: #{toy_submodule_forward.1} parent=0 // pred_fallthru
    _
  // Predicated region
  $region10: #{toy_submodule_forward.1} parent=0 // pred_check
    _
  $region11: #{toy_submodule_forward.1} parent=0 // pred_check_branch
    %13 = sbr.rel (0) target = $region13
  $region12: #{toy_submodule_forward.1} parent=0 // pred_region
    _
  $region13: #{toy_submodule_forward.1} parent=0 // pred_fallthru
    _
  %v14 = vld [vmem:[%s2] sm:$0xff]
  %v15 = vld [vmem:[%s0] sm:$0xff]
  %v16 = vld [vmem:[%s0 + $0x8] sm:$0xff]
  %v17 = vld [vmem:[%s1] sm:$0xff]
  %v18 = vld [vmem:[%s1 + $0x8] sm:$0xff]
  %v19 = vlaneseq
  %v20 = vshrl.u32 %v19, 7
  %v21 = vsub.s32 7, %v20
  %v22 = vrot.slane %v14, %v21
  %v24 = vrot.slane %v14, 4
  %vm25 = vcmask 23552
  %v27 = vsel %vm25, %v17, 0
  %v30 = vsel %vm25, %v18, 0
  %vm32 = vcmask 1042432
  %v33 = vsel %vm32, %v24, 0
  %35 = vmatprep.subr.mxu0 0.0
  %36 = vmatpush1.msra.mxu0 0.0
  %37 = vmatprep.subr.mxu0 0.0
  %38 = vmatpush1.msra.mxu0 0.0
  %39 = vmatprep.subr.mxu0 0.0
  %40 = vmatpush1.msra.mxu0 0.0
  %41 = vmatprep.subr.mxu0 0.0
  %42 = vmatpush1.msra.mxu0 0.0
  %43 = vmatprep.subr.mxu0 0.0
  %44 = vmatpush1.msra.mxu0 0.0
  %45 = vmatprep.subr.mxu0 0.0
  %46 = vmatpush1.msra.mxu0 0.0
  %47 = vmatprep.subr.mxu0 0.0
  %48 = vmatpush1.msra.mxu0 0.0
  %49 = vmatprep.subr.mxu0 0.0
  %50 = vmatpush1.msra.mxu0 0.0
  %51 = vmatprep.subr.mxu0 0.0
  %52 = vmatpush1.msra.mxu0 0.0
  %53 = vmatprep.subr.mxu0 0.0
  %54 = vmatpush1.msra.mxu0 0.0
  %55 = vmatprep.subr.mxu0 0.0
  %56 = vmatpush1.msra.mxu0 0.0
  %57 = vmatprep.subr.mxu0 0.0
  %58 = vmatpush1.msra.mxu0 0.0
  %59 = vmatprep.subr.mxu0 0.0
  %60 = vmatpush1.msra.mxu0 0.0
  %61 = vmatprep.subr.mxu0 0.0
  %62 = vmatpush1.msra.mxu0 0.0
  %63 = vmatprep.subr.mxu0 0.0
  %64 = vmatpush1.msra.mxu0 0.0
  %65 = vmatprep.subr.mxu0 0.0
  %66 = vmatpush1.msra.mxu0 %v33
  %67 = vmatprep.subr.mxu0 0.0
  %68 = vmatpush2.msra.mxu0 0.0
  %69 = vmatprep.subr.mxu0 0.0
  %70 = vmatpush2.msra.mxu0 0.0
  %71 = vmatprep.subr.mxu0 0.0
  %72 = vmatpush2.msra.mxu0 0.0
  %73 = vmatprep.subr.mxu0 0.0
  %74 = vmatpush2.msra.mxu0 0.0
  %75 = vmatprep.subr.mxu0 0.0
  %76 = vmatpush2.msra.mxu0 0.0
  %77 = vmatprep.subr.mxu0 0.0
  %78 = vmatpush2.msra.mxu0 0.0
  %79 = vmatprep.subr.mxu0 0.0
  %80 = vmatpush2.msra.mxu0 0.0
  %81 = vmatprep.subr.mxu0 0.0
  %82 = vmatpush2.msra.mxu0 0.0
  %83 = vmatprep.subr.mxu0 0.0
  %84 = vmatpush2.msra.mxu0 0.0
  %85 = vmatprep.subr.mxu0 0.0
  %86 = vmatpush2.msra.mxu0 0.0
  %87 = vmatprep.subr.mxu0 0.0
  %88 = vmatpush2.msra.mxu0 0.0
  %89 = vmatprep.subr.mxu0 0.0
  %90 = vmatpush2.msra.mxu0 0.0
  %91 = vmatprep.subr.mxu0 0.0
  %92 = vmatpush2.msra.mxu0 0.0
  %93 = vmatprep.subr.mxu0 0.0
  %94 = vmatpush2.msra.mxu0 0.0
  %95 = vmatprep.subr.mxu0 0.0
  %96 = vmatpush2.msra.mxu0 0.0
  %97 = vmatprep.subr.mxu0 0.0
  %98 = vmatpush2.msra.mxu0 0.0
  %99 = vmatprep.mubr.f32.mxu0 0.0
  %100 = vmatmul.mubr.f32.gmra.mxu0 %v27
  %v101 = vpop.f32.mrf.mxu0
  %v102 = vadd.f32 %v22, %v101
  %v103 = vpop.f32.mrf.mxu0
  %104 = vmatprep.mubr.f32.mxu0 0.0
  %105 = vmatmul.mubr.f32.gmra.mxu0 %v30
  %v106 = vpop.f32.mrf.mxu0
  %v107 = vadd.f32 %v22, %v106
  %v108 = vpop.f32.mrf.mxu0
  %109 = vdwg.mxu0
  %110 = vset.pattern.permute.xlu0 4
  %111 = vperm.xlu0 %110, %v14
  %v112 = vpop.permute.xlu0 %111
  %vm114 = vcmask 31744
  %v115 = vsel %vm114, %v14, 0
  %vm117 = vcmask 1043456
  %v119 = vsel %vm117, %v15, 0
  %v122 = vsel %vm117, %v16, 0
  %124 = vmatprep.subr.mxu0 0.0
  %125 = vmatpush1.msra.mxu0 0.0
  %126 = vmatprep.subr.mxu0 0.0
  %127 = vmatpush1.msra.mxu0 0.0
  %128 = vmatprep.subr.mxu0 0.0
  %129 = vmatpush1.msra.mxu0 0.0
  %130 = vmatprep.subr.mxu0 0.0
  %131 = vmatpush1.msra.mxu0 0.0
  %132 = vmatprep.subr.mxu0 0.0
  %133 = vmatpush1.msra.mxu0 0.0
  %134 = vmatprep.subr.mxu0 0.0
  %135 = vmatpush1.msra.mxu0 0.0
  %136 = vmatprep.subr.mxu0 0.0
  %137 = vmatpush1.msra.mxu0 0.0
  %138 = vmatprep.subr.mxu0 0.0
  %139 = vmatpush1.msra.mxu0 0.0
  %140 = vmatprep.subr.mxu0 0.0
  %141 = vmatpush1.msra.mxu0 0.0
  %142 = vmatprep.subr.mxu0 0.0
  %143 = vmatpush1.msra.mxu0 0.0
  %144 = vmatprep.subr.mxu0 0.0
  %145 = vmatpush1.msra.mxu0 0.0
  %146 = vmatprep.subr.mxu0 0.0
  %147 = vmatpush1.msra.mxu0 0.0
  %148 = vmatprep.subr.mxu0 0.0
  %149 = vmatpush1.msra.mxu0 0.0
  %150 = vmatprep.subr.mxu0 0.0
  %151 = vmatpush1.msra.mxu0 0.0
  %152 = vmatprep.subr.mxu0 0.0
  %153 = vmatpush1.msra.mxu0 0.0
  %154 = vmatprep.subr.mxu0 %v122
  %155 = vmatpush1.msra.mxu0 %v119
  %156 = vmatprep.subr.mxu0 0.0
  %157 = vmatpush2.msra.mxu0 0.0
  %158 = vmatprep.subr.mxu0 0.0
  %159 = vmatpush2.msra.mxu0 0.0
  %160 = vmatprep.subr.mxu0 0.0
  %161 = vmatpush2.msra.mxu0 0.0
  %162 = vmatprep.subr.mxu0 0.0
  %163 = vmatpush2.msra.mxu0 0.0
  %164 = vmatprep.subr.mxu0 0.0
  %165 = vmatpush2.msra.mxu0 0.0
  %166 = vmatprep.subr.mxu0 0.0
  %167 = vmatpush2.msra.mxu0 0.0
  %168 = vmatprep.subr.mxu0 0.0
  %169 = vmatpush2.msra.mxu0 0.0
  %170 = vmatprep.subr.mxu0 0.0
  %171 = vmatpush2.msra.mxu0 0.0
  %172 = vmatprep.subr.mxu0 0.0
  %173 = vmatpush2.msra.mxu0 0.0
  %174 = vmatprep.subr.mxu0 0.0
  %175 = vmatpush2.msra.mxu0 0.0
  %176 = vmatprep.subr.mxu0 0.0
  %177 = vmatpush2.msra.mxu0 0.0
  %178 = vmatprep.subr.mxu0 0.0
  %179 = vmatpush2.msra.mxu0 0.0
  %180 = vmatprep.subr.mxu0 0.0
  %181 = vmatpush2.msra.mxu0 0.0
  %182 = vmatprep.subr.mxu0 0.0
  %183 = vmatpush2.msra.mxu0 0.0
  %184 = vmatprep.subr.mxu0 0.0
  %185 = vmatpush2.msra.mxu0 0.0
  %186 = vmatprep.subr.mxu0 0.0
  %187 = vmatpush2.msra.mxu0 0.0
  %188 = vmatprep.mubr.f32.mxu0 0.0
  %189 = vmatmul.mubr.f32.gmra.mxu0 %v115
  %v190 = vpop.f32.mrf.mxu0
  %v191 = vadd.f32 %v112, %v190
  %v192 = vpop.f32.mrf.mxu0
  %v193 = vadd.f32 %v112, %v192
  %194 = vdwg.mxu0
  %v196 = vsel %vm114, %v102, 0
  %v199 = vsel %vm117, %v191, 0
  %v202 = vsel %vm117, %v193, 0
  %204 = vmatprep.subr.mxu0 0.0
  %205 = vmatpush1.msra.mxu0 0.0
  %206 = vmatprep.subr.mxu0 0.0
  %207 = vmatpush1.msra.mxu0 0.0
  %208 = vmatprep.subr.mxu0 0.0
  %209 = vmatpush1.msra.mxu0 0.0
  %210 = vmatprep.subr.mxu0 0.0
  %211 = vmatpush1.msra.mxu0 0.0
  %212 = vmatprep.subr.mxu0 0.0
  %213 = vmatpush1.msra.mxu0 0.0
  %214 = vmatprep.subr.mxu0 0.0
  %215 = vmatpush1.msra.mxu0 0.0
  %216 = vmatprep.subr.mxu0 0.0
  %217 = vmatpush1.msra.mxu0 0.0
  %218 = vmatprep.subr.mxu0 0.0
  %219 = vmatpush1.msra.mxu0 0.0
  %220 = vmatprep.subr.mxu0 0.0
  %221 = vmatpush1.msra.mxu0 0.0
  %222 = vmatprep.subr.mxu0 0.0
  %223 = vmatpush1.msra.mxu0 0.0
  %224 = vmatprep.subr.mxu0 0.0
  %225 = vmatpush1.msra.mxu0 0.0
  %226 = vmatprep.subr.mxu0 0.0
  %227 = vmatpush1.msra.mxu0 0.0
  %228 = vmatprep.subr.mxu0 0.0
  %229 = vmatpush1.msra.mxu0 0.0
  %230 = vmatprep.subr.mxu0 0.0
  %231 = vmatpush1.msra.mxu0 0.0
  %232 = vmatprep.subr.mxu0 0.0
  %233 = vmatpush1.msra.mxu0 0.0
  %234 = vmatprep.subr.mxu0 %v202
  %235 = vmatpush1.msra.mxu0 %v199
  %236 = vmatprep.subr.mxu0 0.0
  %237 = vmatpush2.msra.mxu0 0.0
  %238 = vmatprep.subr.mxu0 0.0
  %239 = vmatpush2.msra.mxu0 0.0
  %240 = vmatprep.subr.mxu0 0.0
  %241 = vmatpush2.msra.mxu0 0.0
  %242 = vmatprep.subr.mxu0 0.0
  %243 = vmatpush2.msra.mxu0 0.0
  %244 = vmatprep.subr.mxu0 0.0
  %245 = vmatpush2.msra.mxu0 0.0
  %246 = vmatprep.subr.mxu0 0.0
  %247 = vmatpush2.msra.mxu0 0.0
  %248 = vmatprep.subr.mxu0 0.0
  %249 = vmatpush2.msra.mxu0 0.0
  %250 = vmatprep.subr.mxu0 0.0
  %251 = vmatpush2.msra.mxu0 0.0
  %252 = vmatprep.subr.mxu0 0.0
  %253 = vmatpush2.msra.mxu0 0.0
  %254 = vmatprep.subr.mxu0 0.0
  %255 = vmatpush2.msra.mxu0 0.0
  %256 = vmatprep.subr.mxu0 0.0
  %257 = vmatpush2.msra.mxu0 0.0
  %258 = vmatprep.subr.mxu0 0.0
  %259 = vmatpush2.msra.mxu0 0.0
  %260 = vmatprep.subr.mxu0 0.0
  %261 = vmatpush2.msra.mxu0 0.0
  %262 = vmatprep.subr.mxu0 0.0
  %263 = vmatpush2.msra.mxu0 0.0
  %264 = vmatprep.subr.mxu0 0.0
  %265 = vmatpush2.msra.mxu0 0.0
  %266 = vmatprep.subr.mxu0 0.0
  %267 = vmatpush2.msra.mxu0 0.0
  %268 = vmatprep.mubr.f32.mxu0 0.0
  %269 = vmatmul.mubr.f32.gmra.mxu0 %v196
  %v270 = vpop.f32.mrf.mxu0
  %v271 = vadd.f32 0.0, %v270
  %v272 = vpop.f32.mrf.mxu0
  %v273 = vadd.f32 0.0, %v272
  %274 = vdwg.mxu0
  %v275 = vrot.slane %v271, 4
  %v276 = vmax.f32 %v271, %v275
  %v277 = vrot.slane %v276, 2
  %v278 = vmax.f32 %v276, %v277
  %v279 = vrot.slane %v278, 1
  %v280 = vmax.f32 %v278, %v279
  %v281 = vrot.slane %v273, 4
  %v282 = vmax.f32 %v273, %v281
  %v283 = vrot.slane %v282, 2
  %v284 = vmax.f32 %v282, %v283
  %v285 = vrot.slane %v284, 1
  %v286 = vmax.f32 %v284, %v285
  %v287 = vsub.f32 %v271, %v280
  %v288 = vsub.f32 %v273, %v286
  %v289 = vmul.f32 %v287, 1.442695
  %v290 = vpow.pop %v289
  %v291 = vmul.f32 %v288, 1.442695
  %v292 = vpow.pop %v291
  %v293 = vrot.slane %v290, 4
  %v294 = vadd.f32 %v290, %v293
  %v295 = vrot.slane %v294, 2
  %v296 = vadd.f32 %v294, %v295
  %v297 = vrot.slane %v296, 1
  %v298 = vadd.f32 %v296, %v297
  %v299 = vrot.slane %v292, 4
  %v300 = vadd.f32 %v292, %v299
  %v301 = vrot.slane %v300, 2
  %v302 = vadd.f32 %v300, %v301
  %v303 = vrot.slane %v302, 1
  %v304 = vadd.f32 %v302, %v303
  %v305 = vrcp.pop %v298
  %v306 = vrcp.pop %v304
  %v307 = vmul.f32 %v290, %v305
  %v308 = vmul.f32 %v292, %v306
  %309 = vrot.lane.b32.xlu0 %v102, 124
  %v310 = vpop.permute.xlu0 %309
  %312 = vxpose.xlu0.b32.start [1/16] %v310, 128
  %313 = vxpose.xlu0.b32.cont [2/16] 0.0, 128
  %314 = vxpose.xlu0.b32.cont [3/16] 0.0, 128
  %315 = vxpose.xlu0.b32.cont [4/16] 0.0, 128
  %316 = vxpose.xlu0.b32.cont [5/16] 0.0, 128
  %317 = vxpose.xlu0.b32.cont [6/16] 0.0, 128
  %318 = vxpose.xlu0.b32.cont [7/16] 0.0, 128
  %319 = vxpose.xlu0.b32.cont [8/16] 0.0, 128
  %320 = vxpose.xlu0.b32.cont [9/16] 0.0, 128
  %321 = vxpose.xlu0.b32.cont [10/16] 0.0, 128
  %322 = vxpose.xlu0.b32.cont [11/16] 0.0, 128
  %323 = vxpose.xlu0.b32.cont [12/16] 0.0, 128
  %324 = vxpose.xlu0.b32.cont [13/16] 0.0, 128
  %325 = vxpose.xlu0.b32.cont [14/16] 0.0, 128
  %326 = vxpose.xlu0.b32.cont [15/16] 0.0, 128
  %327 = vxpose.xlu0.b32.end [16/16] 0.0, 128
  %v328 = vpop.trf.xlu0
  %v329 = vpop.trf.xlu0
  %v330 = vpop.trf.xlu0
  %v331 = vpop.trf.xlu0
  %v332 = vpop.trf.xlu0
  %v333 = vpop.trf.xlu0
  %v334 = vpop.trf.xlu0
  %v335 = vpop.trf.xlu0
  %v336 = vpop.trf.xlu0
  %v337 = vpop.trf.xlu0
  %v338 = vpop.trf.xlu0
  %v339 = vpop.trf.xlu0
  %v340 = vpop.trf.xlu0
  %v341 = vpop.trf.xlu0
  %v342 = vpop.trf.xlu0
  %v343 = vpop.trf.xlu0
  %vm344 = vcmask 64512
  %v346 = vsel %vm344, %v328, 0
  %348 = vmatprep.subr.mxu0 0.0
  %349 = vmatpush1.msra.mxu0 0.0
  %350 = vmatprep.subr.mxu0 0.0
  %351 = vmatpush1.msra.mxu0 0.0
  %352 = vmatprep.subr.mxu0 0.0
  %353 = vmatpush1.msra.mxu0 0.0
  %354 = vmatprep.subr.mxu0 0.0
  %355 = vmatpush1.msra.mxu0 0.0
  %356 = vmatprep.subr.mxu0 0.0
  %357 = vmatpush1.msra.mxu0 0.0
  %358 = vmatprep.subr.mxu0 0.0
  %359 = vmatpush1.msra.mxu0 0.0
  %360 = vmatprep.subr.mxu0 0.0
  %361 = vmatpush1.msra.mxu0 0.0
  %362 = vmatprep.subr.mxu0 0.0
  %363 = vmatpush1.msra.mxu0 0.0
  %364 = vmatprep.subr.mxu0 0.0
  %365 = vmatpush1.msra.mxu0 0.0
  %366 = vmatprep.subr.mxu0 0.0
  %367 = vmatpush1.msra.mxu0 0.0
  %368 = vmatprep.subr.mxu0 0.0
  %369 = vmatpush1.msra.mxu0 0.0
  %370 = vmatprep.subr.mxu0 0.0
  %371 = vmatpush1.msra.mxu0 0.0
  %372 = vmatprep.subr.mxu0 0.0
  %373 = vmatpush1.msra.mxu0 0.0
  %374 = vmatprep.subr.mxu0 0.0
  %375 = vmatpush1.msra.mxu0 0.0
  %376 = vmatprep.subr.mxu0 0.0
  %377 = vmatpush1.msra.mxu0 0.0
  %378 = vmatprep.subr.mxu0 %v308
  %379 = vmatpush1.msra.mxu0 %v307
  %380 = vmatprep.subr.mxu0 0.0
  %381 = vmatpush2.msra.mxu0 0.0
  %382 = vmatprep.subr.mxu0 0.0
  %383 = vmatpush2.msra.mxu0 0.0
  %384 = vmatprep.subr.mxu0 0.0
  %385 = vmatpush2.msra.mxu0 0.0
  %386 = vmatprep.subr.mxu0 0.0
  %387 = vmatpush2.msra.mxu0 0.0
  %388 = vmatprep.subr.mxu0 0.0
  %389 = vmatpush2.msra.mxu0 0.0
  %390 = vmatprep.subr.mxu0 0.0
  %391 = vmatpush2.msra.mxu0 0.0
  %392 = vmatprep.subr.mxu0 0.0
  %393 = vmatpush2.msra.mxu0 0.0
  %394 = vmatprep.subr.mxu0 0.0
  %395 = vmatpush2.msra.mxu0 0.0
  %396 = vmatprep.subr.mxu0 0.0
  %397 = vmatpush2.msra.mxu0 0.0
  %398 = vmatprep.subr.mxu0 0.0
  %399 = vmatpush2.msra.mxu0 0.0
  %400 = vmatprep.subr.mxu0 0.0
  %401 = vmatpush2.msra.mxu0 0.0
  %402 = vmatprep.subr.mxu0 0.0
  %403 = vmatpush2.msra.mxu0 0.0
  %404 = vmatprep.subr.mxu0 0.0
  %405 = vmatpush2.msra.mxu0 0.0
  %406 = vmatprep.subr.mxu0 0.0
  %407 = vmatpush2.msra.mxu0 0.0
  %408 = vmatprep.subr.mxu0 0.0
  %409 = vmatpush2.msra.mxu0 0.0
  %410 = vmatprep.subr.mxu0 0.0
  %411 = vmatpush2.msra.mxu0 0.0
  %412 = vmatprep.mubr.f32.mxu0 0.0
  %413 = vmatmul.mubr.f32.gmra.mxu0 %v346
  %v414 = vpop.f32.mrf.mxu0
  %v415 = vadd.f32 0.0, %v414
  %v416 = vpop.f32.mrf.mxu0
  %v417 = vadd.f32 0.0, %v416
  %418 = vdwg.mxu0
  %v419 = vrot.slane %v15, 4
  %v420 = vrot.slane %v16, 4
  %v421 = vsel %vm117, %v419, 0
  %v423 = vsel %vm117, %v420, 0
  %425 = vmatprep.subr.mxu0 0.0
  %426 = vmatpush1.msra.mxu0 0.0
  %427 = vmatprep.subr.mxu0 0.0
  %428 = vmatpush1.msra.mxu0 0.0
  %429 = vmatprep.subr.mxu0 0.0
  %430 = vmatpush1.msra.mxu0 0.0
  %431 = vmatprep.subr.mxu0 0.0
  %432 = vmatpush1.msra.mxu0 0.0
  %433 = vmatprep.subr.mxu0 0.0
  %434 = vmatpush1.msra.mxu0 0.0
  %435 = vmatprep.subr.mxu0 0.0
  %436 = vmatpush1.msra.mxu0 0.0
  %437 = vmatprep.subr.mxu0 0.0
  %438 = vmatpush1.msra.mxu0 0.0
  %439 = vmatprep.subr.mxu0 0.0
  %440 = vmatpush1.msra.mxu0 0.0
  %441 = vmatprep.subr.mxu0 0.0
  %442 = vmatpush1.msra.mxu0 0.0
  %443 = vmatprep.subr.mxu0 0.0
  %444 = vmatpush1.msra.mxu0 0.0
  %445 = vmatprep.subr.mxu0 0.0
  %446 = vmatpush1.msra.mxu0 0.0
  %447 = vmatprep.subr.mxu0 0.0
  %448 = vmatpush1.msra.mxu0 0.0
  %449 = vmatprep.subr.mxu0 0.0
  %450 = vmatpush1.msra.mxu0 0.0
  %451 = vmatprep.subr.mxu0 0.0
  %452 = vmatpush1.msra.mxu0 0.0
  %453 = vmatprep.subr.mxu0 0.0
  %454 = vmatpush1.msra.mxu0 0.0
  %455 = vmatprep.subr.mxu0 %v423
  %456 = vmatpush1.msra.mxu0 %v421
  %457 = vmatprep.subr.mxu0 0.0
  %458 = vmatpush2.msra.mxu0 0.0
  %459 = vmatprep.subr.mxu0 0.0
  %460 = vmatpush2.msra.mxu0 0.0
  %461 = vmatprep.subr.mxu0 0.0
  %462 = vmatpush2.msra.mxu0 0.0
  %463 = vmatprep.subr.mxu0 0.0
  %464 = vmatpush2.msra.mxu0 0.0
  %465 = vmatprep.subr.mxu0 0.0
  %466 = vmatpush2.msra.mxu0 0.0
  %467 = vmatprep.subr.mxu0 0.0
  %468 = vmatpush2.msra.mxu0 0.0
  %469 = vmatprep.subr.mxu0 0.0
  %470 = vmatpush2.msra.mxu0 0.0
  %471 = vmatprep.subr.mxu0 0.0
  %472 = vmatpush2.msra.mxu0 0.0
  %473 = vmatprep.subr.mxu0 0.0
  %474 = vmatpush2.msra.mxu0 0.0
  %475 = vmatprep.subr.mxu0 0.0
  %476 = vmatpush2.msra.mxu0 0.0
  %477 = vmatprep.subr.mxu0 0.0
  %478 = vmatpush2.msra.mxu0 0.0
  %479 = vmatprep.subr.mxu0 0.0
  %480 = vmatpush2.msra.mxu0 0.0
  %481 = vmatprep.subr.mxu0 0.0
  %482 = vmatpush2.msra.mxu0 0.0
  %483 = vmatprep.subr.mxu0 0.0
  %484 = vmatpush2.msra.mxu0 0.0
  %485 = vmatprep.subr.mxu0 0.0
  %486 = vmatpush2.msra.mxu0 0.0
  %487 = vmatprep.subr.mxu0 0.0
  %488 = vmatpush2.msra.mxu0 0.0
  %489 = vmatprep.mubr.f32.mxu0 0.0
  %490 = vmatmul.mubr.f32.gmra.mxu0 %v115
  %v491 = vpop.f32.mrf.mxu0
  %v492 = vadd.f32 %v112, %v491
  %v493 = vpop.f32.mrf.mxu0
  %v494 = vadd.f32 %v112, %v493
  %495 = vdwg.mxu0
  %v497 = vsel %vm114, %v107, 0
  %v500 = vsel %vm117, %v492, 0
  %v503 = vsel %vm117, %v494, 0
  %505 = vmatprep.subr.mxu0 0.0
  %506 = vmatpush1.msra.mxu0 0.0
  %507 = vmatprep.subr.mxu0 0.0
  %508 = vmatpush1.msra.mxu0 0.0
  %509 = vmatprep.subr.mxu0 0.0
  %510 = vmatpush1.msra.mxu0 0.0
  %511 = vmatprep.subr.mxu0 0.0
  %512 = vmatpush1.msra.mxu0 0.0
  %513 = vmatprep.subr.mxu0 0.0
  %514 = vmatpush1.msra.mxu0 0.0
  %515 = vmatprep.subr.mxu0 0.0
  %516 = vmatpush1.msra.mxu0 0.0
  %517 = vmatprep.subr.mxu0 0.0
  %518 = vmatpush1.msra.mxu0 0.0
  %519 = vmatprep.subr.mxu0 0.0
  %520 = vmatpush1.msra.mxu0 0.0
  %521 = vmatprep.subr.mxu0 0.0
  %522 = vmatpush1.msra.mxu0 0.0
  %523 = vmatprep.subr.mxu0 0.0
  %524 = vmatpush1.msra.mxu0 0.0
  %525 = vmatprep.subr.mxu0 0.0
  %526 = vmatpush1.msra.mxu0 0.0
  %527 = vmatprep.subr.mxu0 0.0
  %528 = vmatpush1.msra.mxu0 0.0
  %529 = vmatprep.subr.mxu0 0.0
  %530 = vmatpush1.msra.mxu0 0.0
  %531 = vmatprep.subr.mxu0 0.0
  %532 = vmatpush1.msra.mxu0 0.0
  %533 = vmatprep.subr.mxu0 0.0
  %534 = vmatpush1.msra.mxu0 0.0
  %535 = vmatprep.subr.mxu0 %v503
  %536 = vmatpush1.msra.mxu0 %v500
  %537 = vmatprep.subr.mxu0 0.0
  %538 = vmatpush2.msra.mxu0 0.0
  %539 = vmatprep.subr.mxu0 0.0
  %540 = vmatpush2.msra.mxu0 0.0
  %541 = vmatprep.subr.mxu0 0.0
  %542 = vmatpush2.msra.mxu0 0.0
  %543 = vmatprep.subr.mxu0 0.0
  %544 = vmatpush2.msra.mxu0 0.0
  %545 = vmatprep.subr.mxu0 0.0
  %546 = vmatpush2.msra.mxu0 0.0
  %547 = vmatprep.subr.mxu0 0.0
  %548 = vmatpush2.msra.mxu0 0.0
  %549 = vmatprep.subr.mxu0 0.0
  %550 = vmatpush2.msra.mxu0 0.0
  %551 = vmatprep.subr.mxu0 0.0
  %552 = vmatpush2.msra.mxu0 0.0
  %553 = vmatprep.subr.mxu0 0.0
  %554 = vmatpush2.msra.mxu0 0.0
  %555 = vmatprep.subr.mxu0 0.0
  %556 = vmatpush2.msra.mxu0 0.0
  %557 = vmatprep.subr.mxu0 0.0
  %558 = vmatpush2.msra.mxu0 0.0
  %559 = vmatprep.subr.mxu0 0.0
  %560 = vmatpush2.msra.mxu0 0.0
  %561 = vmatprep.subr.mxu0 0.0
  %562 = vmatpush2.msra.mxu0 0.0
  %563 = vmatprep.subr.mxu0 0.0
  %564 = vmatpush2.msra.mxu0 0.0
  %565 = vmatprep.subr.mxu0 0.0
  %566 = vmatpush2.msra.mxu0 0.0
  %567 = vmatprep.subr.mxu0 0.0
  %568 = vmatpush2.msra.mxu0 0.0
  %569 = vmatprep.mubr.f32.mxu0 0.0
  %570 = vmatmul.mubr.f32.gmra.mxu0 %v497
  %v571 = vpop.f32.mrf.mxu0
  %v572 = vadd.f32 0.0, %v571
  %v573 = vpop.f32.mrf.mxu0
  %v574 = vadd.f32 0.0, %v573
  %575 = vdwg.mxu0
  %v576 = vrot.slane %v572, 4
  %v577 = vmax.f32 %v572, %v576
  %v578 = vrot.slane %v577, 2
  %v579 = vmax.f32 %v577, %v578
  %v580 = vrot.slane %v579, 1
  %v581 = vmax.f32 %v579, %v580
  %v582 = vrot.slane %v574, 4
  %v583 = vmax.f32 %v574, %v582
  %v584 = vrot.slane %v583, 2
  %v585 = vmax.f32 %v583, %v584
  %v586 = vrot.slane %v585, 1
  %v587 = vmax.f32 %v585, %v586
  %v588 = vsub.f32 %v572, %v581
  %v589 = vsub.f32 %v574, %v587
  %v590 = vmul.f32 %v588, 1.442695
  %v591 = vpow.pop %v590
  %v592 = vmul.f32 %v589, 1.442695
  %v593 = vpow.pop %v592
  %v594 = vrot.slane %v591, 4
  %v595 = vadd.f32 %v591, %v594
  %v596 = vrot.slane %v595, 2
  %v597 = vadd.f32 %v595, %v596
  %v598 = vrot.slane %v597, 1
  %v599 = vadd.f32 %v597, %v598
  %v600 = vrot.slane %v593, 4
  %v601 = vadd.f32 %v593, %v600
  %v602 = vrot.slane %v601, 2
  %v603 = vadd.f32 %v601, %v602
  %v604 = vrot.slane %v603, 1
  %v605 = vadd.f32 %v603, %v604
  %v606 = vrcp.pop %v599
  %v607 = vrcp.pop %v605
  %v608 = vmul.f32 %v591, %v606
  %v609 = vmul.f32 %v593, %v607
  %610 = vrot.lane.b32.xlu0 %v107, 124
  %v611 = vpop.permute.xlu0 %610
  %613 = vxpose.xlu0.b32.start [1/16] %v611, 128
  %614 = vxpose.xlu0.b32.cont [2/16] 0.0, 128
  %615 = vxpose.xlu0.b32.cont [3/16] 0.0, 128
  %616 = vxpose.xlu0.b32.cont [4/16] 0.0, 128
  %617 = vxpose.xlu0.b32.cont [5/16] 0.0, 128
  %618 = vxpose.xlu0.b32.cont [6/16] 0.0, 128
  %619 = vxpose.xlu0.b32.cont [7/16] 0.0, 128
  %620 = vxpose.xlu0.b32.cont [8/16] 0.0, 128
  %621 = vxpose.xlu0.b32.cont [9/16] 0.0, 128
  %622 = vxpose.xlu0.b32.cont [10/16] 0.0, 128
  %623 = vxpose.xlu0.b32.cont [11/16] 0.0, 128
  %624 = vxpose.xlu0.b32.cont [12/16] 0.0, 128
  %625 = vxpose.xlu0.b32.cont [13/16] 0.0, 128
  %626 = vxpose.xlu0.b32.cont [14/16] 0.0, 128
  %627 = vxpose.xlu0.b32.cont [15/16] 0.0, 128
  %628 = vxpose.xlu0.b32.end [16/16] 0.0, 128
  %v629 = vpop.trf.xlu0
  %v630 = vpop.trf.xlu0
  %v631 = vpop.trf.xlu0
  %v632 = vpop.trf.xlu0
  %v633 = vpop.trf.xlu0
  %v634 = vpop.trf.xlu0
  %v635 = vpop.trf.xlu0
  %v636 = vpop.trf.xlu0
  %v637 = vpop.trf.xlu0
  %v638 = vpop.trf.xlu0
  %v639 = vpop.trf.xlu0
  %v640 = vpop.trf.xlu0
  %v641 = vpop.trf.xlu0
  %v642 = vpop.trf.xlu0
  %v643 = vpop.trf.xlu0
  %v644 = vpop.trf.xlu0
  %v646 = vsel %vm344, %v629, 0
  %648 = vmatprep.subr.mxu0 0.0
  %649 = vmatpush1.msra.mxu0 0.0
  %650 = vmatprep.subr.mxu0 0.0
  %651 = vmatpush1.msra.mxu0 0.0
  %652 = vmatprep.subr.mxu0 0.0
  %653 = vmatpush1.msra.mxu0 0.0
  %654 = vmatprep.subr.mxu0 0.0
  %655 = vmatpush1.msra.mxu0 0.0
  %656 = vmatprep.subr.mxu0 0.0
  %657 = vmatpush1.msra.mxu0 0.0
  %658 = vmatprep.subr.mxu0 0.0
  %659 = vmatpush1.msra.mxu0 0.0
  %660 = vmatprep.subr.mxu0 0.0
  %661 = vmatpush1.msra.mxu0 0.0
  %662 = vmatprep.subr.mxu0 0.0
  %663 = vmatpush1.msra.mxu0 0.0
  %664 = vmatprep.subr.mxu0 0.0
  %665 = vmatpush1.msra.mxu0 0.0
  %666 = vmatprep.subr.mxu0 0.0
  %667 = vmatpush1.msra.mxu0 0.0
  %668 = vmatprep.subr.mxu0 0.0
  %669 = vmatpush1.msra.mxu0 0.0
  %670 = vmatprep.subr.mxu0 0.0
  %671 = vmatpush1.msra.mxu0 0.0
  %672 = vmatprep.subr.mxu0 0.0
  %673 = vmatpush1.msra.mxu0 0.0
  %674 = vmatprep.subr.mxu0 0.0
  %675 = vmatpush1.msra.mxu0 0.0
  %676 = vmatprep.subr.mxu0 0.0
  %677 = vmatpush1.msra.mxu0 0.0
  %678 = vmatprep.subr.mxu0 %v609
  %679 = vmatpush1.msra.mxu0 %v608
  %680 = vmatprep.subr.mxu0 0.0
  %681 = vmatpush2.msra.mxu0 0.0
  %682 = vmatprep.subr.mxu0 0.0
  %683 = vmatpush2.msra.mxu0 0.0
  %684 = vmatprep.subr.mxu0 0.0
  %685 = vmatpush2.msra.mxu0 0.0
  %686 = vmatprep.subr.mxu0 0.0
  %687 = vmatpush2.msra.mxu0 0.0
  %688 = vmatprep.subr.mxu0 0.0
  %689 = vmatpush2.msra.mxu0 0.0
  %690 = vmatprep.subr.mxu0 0.0
  %691 = vmatpush2.msra.mxu0 0.0
  %692 = vmatprep.subr.mxu0 0.0
  %693 = vmatpush2.msra.mxu0 0.0
  %694 = vmatprep.subr.mxu0 0.0
  %695 = vmatpush2.msra.mxu0 0.0
  %696 = vmatprep.subr.mxu0 0.0
  %697 = vmatpush2.msra.mxu0 0.0
  %698 = vmatprep.subr.mxu0 0.0
  %699 = vmatpush2.msra.mxu0 0.0
  %700 = vmatprep.subr.mxu0 0.0
  %701 = vmatpush2.msra.mxu0 0.0
  %702 = vmatprep.subr.mxu0 0.0
  %703 = vmatpush2.msra.mxu0 0.0
  %704 = vmatprep.subr.mxu0 0.0
  %705 = vmatpush2.msra.mxu0 0.0
  %706 = vmatprep.subr.mxu0 0.0
  %707 = vmatpush2.msra.mxu0 0.0
  %708 = vmatprep.subr.mxu0 0.0
  %709 = vmatpush2.msra.mxu0 0.0
  %710 = vmatprep.subr.mxu0 0.0
  %711 = vmatpush2.msra.mxu0 0.0
  %712 = vmatprep.mubr.f32.mxu0 0.0
  %713 = vmatmul.mubr.f32.gmra.mxu0 %v646
  %v714 = vpop.f32.mrf.mxu0
  %v715 = vadd.f32 0.0, %v714
  %v716 = vpop.f32.mrf.mxu0
  %v717 = vadd.f32 0.0, %v716
  %718 = vdwg.mxu0
  %v721 = vrot.slane %v715, 4
  %v722 = vrot.slane %v717, 4
  %v725 = vsel %vm117, %v415, %v721
  %v726 = vsel %vm117, %v417, %v722
  %727 = vst [vmem:[%s3] sm:$0xff] %v725
  %728 = vst [vmem:[%s3 + $0x8] sm:$0xff] %v726
  // Predicated region
  $region14: #{toy_submodule_forward.1} parent=0 // pred_check
    _
  $region15: #{toy_submodule_forward.1} parent=0 // pred_check_branch
    %730 = sbr.rel (0) target = $region17
  $region16: #{toy_submodule_forward.1} parent=0 // pred_region
    _
  $region17: #{toy_submodule_forward.1} parent=0 // pred_fallthru
    _
  // Predicated region
  $region18: #{toy_submodule_forward.1} parent=0 // pred_check
    _
  $region19: #{toy_submodule_forward.1} parent=0 // pred_check_branch
    %732 = sbr.rel (0) target = $region21
  $region20: #{toy_submodule_forward.1} parent=0 // pred_region
    _
  $region21: #{toy_submodule_forward.1} parent=0 // pred_fallthru
    _

</llo_original>
